<compile_context>
chip_gen: v7x
topology: tpu7x:2x2x1
jax: 0.10.0
libtpu: 0.0.40
codegen_flags: <defaults>
</compile_context>

<pallas_src>
import functools

import jax
import jax.numpy as jnp
from jax.experimental import pallas as pl
from jax.experimental.pallas import tpu as pltpu


MARGIN = 0.5


# --------------------------------------------------------------------------
# Fused kernel: streamed mean-pool over the sequence axis + contrastive tail.
# grid = (S // ts,)   (sequence reduction axis only; whole batch per block)
# --------------------------------------------------------------------------
def _fused_contrastive_kernel(th_ref, mol_x_ref, w_mol_ref, loss_ref, acc_ref,
                              *, inv_seq_len, seq_chunk, margin):
    j = pl.program_id(0)

    @pl.when(j == 0)
    def _():
        acc_ref[...] = jnp.zeros_like(acc_ref)

    # ---- accumulate the sequence sum of this [B, ts, H] bf16 block in f32 ---
    ts = th_ref.shape[1]
    n_chunks = ts // seq_chunk
    if n_chunks <= 1:
        acc_ref[...] += jnp.sum(th_ref[...].astype(jnp.float32), axis=1)
    else:
        # Chunked reduction bounds the live f32 intermediate (<= B*chunk*H*4 B)
        # so large seq tiles do not spill vregs / blow up VMEM temps.
        def body(c, acc):
            s0 = pl.multiple_of(c * seq_chunk, seq_chunk)
            chunk = th_ref[:, pl.ds(s0, seq_chunk), :].astype(jnp.float32)
            return acc + jnp.sum(chunk, axis=1)

        acc_ref[...] += jax.lax.fori_loop(
            0, n_chunks, body, jnp.zeros(acc_ref.shape, jnp.float32),
            unroll=True)

    # ---- finalize: molecule projection + normalize + triplet loss -----------
    @pl.when(j == pl.num_programs(0) - 1)
    def _():
        text_feat = acc_ref[...] * inv_seq_len                 # [B, H] f32

        # frozen molecule projection head
        mol_feat = jnp.dot(
            mol_x_ref[...].astype(jnp.float32),
            w_mol_ref[...].astype(jnp.float32),
            preferred_element_type=jnp.float32,
        )                                                      # [B, H]

        # L2 normalize via rsqrt (EUP) instead of sqrt + divide.
        tn = text_feat * jax.lax.rsqrt(
            jnp.sum(text_feat * text_feat, axis=1, keepdims=True))
        mn = mol_feat * jax.lax.rsqrt(
            jnp.sum(mol_feat * mol_feat, axis=1, keepdims=True))

        # pairwise cosine similarity: contract last dims directly (no .T).
        cos = jax.lax.dot_general(
            tn, mn, dimension_numbers=(((1,), (1,)), ((), ())),
            preferred_element_type=jnp.float32,
        )                                                      # [B, B]
        dist = 1.0 - cos

        # positive pair distance = diag(dist), computed as a row-wise dot.
        pos = 1.0 - jnp.sum(tn * mn, axis=1, keepdims=True)    # [B, 1]

        # negatives: mask the diagonal with +inf, min over each row.
        b = dist.shape[0]
        row = jax.lax.broadcasted_iota(jnp.int32, (b, b), 0)
        col = jax.lax.broadcasted_iota(jnp.int32, (b, b), 1)
        neg = jnp.where(row == col, jnp.float32(jnp.inf), dist)
        closest = jnp.min(neg, axis=1, keepdims=True)          # [B, 1]

        losses = jnp.maximum(pos - closest + margin, 0.0)      # [B, 1]
        loss_ref[...] = jnp.sum(losses, keepdims=True) * (1.0 / float(b))


# --------------------------------------------------------------------------
# Tile / budget selection helpers.
# --------------------------------------------------------------------------
def _seq_block_budget_bytes():
    """~8 MiB blocks on v5e/v6e (128 MiB VMEM), ~6 MiB on v7x (64 MiB VMEM)."""
    try:
        info = pltpu.get_tpu_info()
        vmem = getattr(info, "vmem_capacity_bytes", None)
        if vmem is not None and vmem <= 80 * 1024 * 1024:
            return 6 * 1024 * 1024
    except Exception:
        pass
    return 8 * 1024 * 1024


def _choose_seq_tile(S, per_seq_row_bytes, budget_bytes):
    """Largest seq tile dividing S (16-aligned for bf16 sublane packing,
    falling back to 8-aligned) whose [B, ts, H] block fits the budget."""
    for step in (16, 8):
        if S % step == 0:
            cands = [d for d in range(step, S + 1, step) if S % d == 0]
            fitting = [d for d in cands if d * per_seq_row_bytes <= budget_bytes]
            return max(fitting) if fitting else min(cands)
    return S  # awkward sequence length: take the whole sequence in one block


def _choose_seq_chunk(ts, max_chunk=256):
    """Largest 8-aligned divisor of ts <= max_chunk (bounds f32 live range)."""
    if ts <= max_chunk:
        return ts
    best = 8
    for d in range(8, max_chunk + 1, 8):
        if ts % d == 0:
            best = d
    return best


# --------------------------------------------------------------------------
# Wrapper.
# --------------------------------------------------------------------------
def contrastive_loss(text_hidden, mol_x, w_mol, *, margin=MARGIN):
    B, S, H = text_hidden.shape
    DIN = mol_x.shape[1]
    elem = jnp.dtype(text_hidden.dtype).itemsize

    budget = _seq_block_budget_bytes()
    ts = _choose_seq_tile(S, B * H * elem, budget)
    seq_chunk = _choose_seq_chunk(ts)
    grid = (S // ts,)

    block_bytes = B * ts * H * elem
    side_bytes = (mol_x.size * mol_x.dtype.itemsize
                  + w_mol.size * w_mol.dtype.itemsize)
    # double-buffered text block + (tiny) side operands + f32 accumulator.
    vmem_need = 2 * block_bytes + 2 * side_bytes + B * H * 4 + (2 << 20)
    vmem_limit = int(min(max(vmem_need, 32 << 20), 48 << 20))

    cost = pl.CostEstimate(
        flops=B * S * H + 2 * B * DIN * H + 2 * B * B * H,
        transcendentals=2 * B,
        bytes_accessed=B * S * H * elem + side_bytes + 4,
    )

    kernel = functools.partial(
        _fused_contrastive_kernel,
        inv_seq_len=1.0 / float(S),
        seq_chunk=seq_chunk,
        margin=float(margin),
    )

    out = pl.pallas_call(
        kernel,
        out_shape=jax.ShapeDtypeStruct((1, 1), jnp.float32),
        grid_spec=pltpu.PrefetchScalarGridSpec(
            num_scalar_prefetch=0,
            grid=grid,
            in_specs=[
                pl.BlockSpec((B, ts, H), lambda j: (0, j, 0)),   # streamed
                pl.BlockSpec((B, DIN), lambda j: (0, 0)),        # resident
                pl.BlockSpec((DIN, H), lambda j: (0, 0)),        # resident
            ],
            out_specs=pl.BlockSpec((1, 1), lambda j: (0, 0)),
            scratch_shapes=[pltpu.VMEM((B, H), jnp.float32)],    # seq-sum acc
        ),
        compiler_params=pltpu.CompilerParams(
            dimension_semantics=("arbitrary",),   # sequence reduction axis
            vmem_limit_bytes=vmem_limit,
        ),
        cost_estimate=cost,
    )(text_hidden, mol_x, w_mol)
    return out[0, 0]


# --------------------------------------------------------------------------
# Pure-JAX reference (same math as the PyTorch module's forward).
# --------------------------------------------------------------------------
def reference_loss(text_hidden, mol_x, w_mol, margin=MARGIN):
    text_feat = jnp.mean(text_hidden.astype(jnp.float32), axis=1)
    mol_feat = mol_x.astype(jnp.float32) @ w_mol.astype(jnp.float32)
    tn = text_feat / jnp.linalg.norm(text_feat, axis=1, keepdims=True)
    mn = mol_feat / jnp.linalg.norm(mol_feat, axis=1, keepdims=True)
    cos = tn @ mn.T
    dist = 1.0 - cos
    B = dist.shape[0]
    pos = jnp.diag(dist)
    eye = jnp.eye(B, dtype=bool)
    neg = jnp.where(eye, jnp.inf, dist)
    closest = jnp.min(neg, axis=1)
    return jnp.mean(jnp.maximum(pos - closest + margin, 0.0))


if __name__ == "__main__":
    B, S, H, DIN = 4, 8, 128, 64   # batch, seq len, hidden dim, molecule dim

    key = jax.random.PRNGKey(0)
    k1, k2, k3 = jax.random.split(key, 3)
    # synthetic "last_hidden_state" from the text model (streamed as bf16)
    text_hidden = jax.random.normal(k1, (B, S, H), dtype=jnp.float32).astype(
        jnp.bfloat16)
    # synthetic molecule-model input features
    mol_x = jax.random.normal(k2, (B, DIN), dtype=jnp.float32)
    # deterministic frozen projection weights (molecule_model head)
    w_mol = jax.random.normal(k3, (DIN, H), dtype=jnp.float32) * 0.05

    loss = contrastive_loss(text_hidden, mol_x, w_mol)
    loss = jax.block_until_ready(loss)

    ref = reference_loss(text_hidden, mol_x, w_mol)
    assert jnp.allclose(loss, ref, atol=2e-3, rtol=2e-3), (loss, ref)

    print("KERNEL_OK")
</pallas_src>

<mosaic_0001>
module attributes {stable_mosaic.version = 11 : i64} {
  func.func @_fused_contrastive_kernel(%arg0: i32, %arg1: memref<4x8x128xbf16, #tpu.memory_space<vmem>>, %arg2: memref<4x64xf32, #tpu.memory_space<vmem>>, %arg3: memref<64x128xf32, #tpu.memory_space<vmem>>, %arg4: memref<1x1xf32, #tpu.memory_space<vmem>>, %arg5: memref<4x128xf32, #tpu.memory_space<vmem>>) attributes {dimension_semantics = [#tpu.dimension_semantics<arbitrary>], iteration_bounds = array<i64: 1>, scalar_prefetch = 0 : i64, scratch_operands = 1 : i64, tpu.core_type = #tpu.core_type<tc>, window_params = [{transform_indices = @transform_0, window_bounds = array<i64: 4, 8, 128>}, {pipeline_mode = #tpu.pipeline_mode<synchronous>, transform_indices = @transform_1, window_bounds = array<i64: 4, 64>}, {pipeline_mode = #tpu.pipeline_mode<synchronous>, transform_indices = @transform_2, window_bounds = array<i64: 64, 128>}, {pipeline_mode = #tpu.pipeline_mode<synchronous>, transform_indices = @transform_3, window_bounds = array<i64: 1, 1>}]} {
    %c0_i32 = arith.constant 0 : i32
    %0 = arith.cmpi eq, %arg0, %c0_i32 : i32
    %1 = arith.extui %0 : i1 to i32
    %c0_i32_0 = arith.constant 0 : i32
    %2 = arith.cmpi ne, %1, %c0_i32_0 : i32
    scf.if %2 {
      %cst_9 = arith.constant 0.000000e+00 : f32
      %12 = vector.broadcast %cst_9 : f32 to vector<4x128xf32>
      %c0_10 = arith.constant 0 : index
      %c0_11 = arith.constant 0 : index
      %13 = vector.load %arg5[%c0_10, %c0_11] : memref<4x128xf32, #tpu.memory_space<vmem>>, vector<4x128xf32>
      tpu.vector_store %arg5[%c0_10, %c0_11], %12 {strides = array<i32>} : memref<4x128xf32, #tpu.memory_space<vmem>>, vector<4x128xf32>,
    } else {
    }
    %c0 = arith.constant 0 : index
    %c0_1 = arith.constant 0 : index
    %3 = vector.load %arg5[%c0, %c0_1] : memref<4x128xf32, #tpu.memory_space<vmem>>, vector<4x128xf32>
    %c0_2 = arith.constant 0 : index
    %c0_3 = arith.constant 0 : index
    %c0_4 = arith.constant 0 : index
    %4 = vector.load %arg1[%c0_2, %c0_3, %c0_4] : memref<4x8x128xbf16, #tpu.memory_space<vmem>>, vector<4x8x128xbf16>
    %5 = arith.extf %4 : vector<4x8x128xbf16> to vector<4x8x128xf32>
    %cst = arith.constant dense<0.000000e+00> : vector<4x128xf32>
    %6 = vector.multi_reduction <add>, %5, %cst [1] : vector<4x8x128xf32> to vector<4x128xf32>
    %7 = arith.addf %3, %6 : vector<4x128xf32>
    %c0_5 = arith.constant 0 : index
    %c0_6 = arith.constant 0 : index
    %8 = vector.load %arg5[%c0_5, %c0_6] : memref<4x128xf32, #tpu.memory_space<vmem>>, vector<4x128xf32>
    tpu.vector_store %arg5[%c0_5, %c0_6], %7 {strides = array<i32>} : memref<4x128xf32, #tpu.memory_space<vmem>>, vector<4x128xf32>,
    %c0_i32_7 = arith.constant 0 : i32
    %9 = arith.cmpi eq, %arg0, %c0_i32_7 : i32
    %10 = arith.extui %9 : i1 to i32
    %c0_i32_8 = arith.constant 0 : i32
    %11 = arith.cmpi ne, %10, %c0_i32_8 : i32
    scf.if %11 {
      %c0_9 = arith.constant 0 : index
      %c0_10 = arith.constant 0 : index
      %12 = vector.load %arg5[%c0_9, %c0_10] : memref<4x128xf32, #tpu.memory_space<vmem>>, vector<4x128xf32>
      %cst_11 = arith.constant 1.250000e-01 : f32
      %13 = vector.broadcast %cst_11 : f32 to vector<4x128xf32>
      %14 = arith.mulf %12, %13 : vector<4x128xf32>
      %c0_12 = arith.constant 0 : index
      %c0_13 = arith.constant 0 : index
      %15 = vector.load %arg2[%c0_12, %c0_13] : memref<4x64xf32, #tpu.memory_space<vmem>>, vector<4x64xf32>
      %c0_14 = arith.constant 0 : index
      %c0_15 = arith.constant 0 : index
      %16 = vector.load %arg3[%c0_14, %c0_15] : memref<64x128xf32, #tpu.memory_space<vmem>>, vector<64x128xf32>
      %cst_16 = arith.constant dense<0.000000e+00> : vector<4x128xf32>
      %17 = tpu.matmul %15, %16, %cst_16 {dimension_numbers = #tpu.dot_dimension_numbers<[1], [0], [0], [1], [0, 0, 1, 1], [], []>} : vector<4x64xf32>, vector<64x128xf32>, vector<4x128xf32> -> vector<4x128xf32>
      %18 = arith.mulf %14, %14 : vector<4x128xf32>
      %cst_17 = arith.constant dense<0.000000e+00> : vector<4xf32>
      %19 = vector.multi_reduction <add>, %18, %cst_17 [1] : vector<4x128xf32> to vector<4xf32>
      %20 = vector.shape_cast %19 : vector<4xf32> to vector<4x1xf32>
      %21 = math.rsqrt %20 : vector<4x1xf32>
      %22 = vector.broadcast %21 : vector<4x1xf32> to vector<4x128xf32>
      %23 = arith.mulf %14, %22 : vector<4x128xf32>
      %24 = arith.mulf %17, %17 : vector<4x128xf32>
      %cst_18 = arith.constant dense<0.000000e+00> : vector<4xf32>
      %25 = vector.multi_reduction <add>, %24, %cst_18 [1] : vector<4x128xf32> to vector<4xf32>
      %26 = vector.shape_cast %25 : vector<4xf32> to vector<4x1xf32>
      %27 = math.rsqrt %26 : vector<4x1xf32>
      %28 = vector.broadcast %27 : vector<4x1xf32> to vector<4x128xf32>
      %29 = arith.mulf %17, %28 : vector<4x128xf32>
      %cst_19 = arith.constant dense<0.000000e+00> : vector<4x4xf32>
      %30 = tpu.matmul %23, %29, %cst_19 {dimension_numbers = #tpu.dot_dimension_numbers<[1], [1], [0], [0], [0, 0, 1, 0], [], []>} : vector<4x128xf32>, vector<4x128xf32>, vector<4x4xf32> -> vector<4x4xf32>
      %cst_20 = arith.constant 1.000000e+00 : f32
      %31 = vector.broadcast %cst_20 : f32 to vector<4x4xf32>
      %32 = arith.subf %31, %30 : vector<4x4xf32>
      %33 = arith.mulf %23, %29 : vector<4x128xf32>
      %cst_21 = arith.constant dense<0.000000e+00> : vector<4xf32>
      %34 = vector.multi_reduction <add>, %33, %cst_21 [1] : vector<4x128xf32> to vector<4xf32>
      %35 = vector.shape_cast %34 : vector<4xf32> to vector<4x1xf32>
      %cst_22 = arith.constant 1.000000e+00 : f32
      %36 = vector.broadcast %cst_22 : f32 to vector<4x1xf32>
      %37 = arith.subf %36, %35 : vector<4x1xf32>
      %38 = tpu.iota {dimensions = array<i32: 0>} : vector<4x4xi32>
      %39 = tpu.iota {dimensions = array<i32: 1>} : vector<4x4xi32>
      %40 = arith.cmpi eq, %38, %39 : vector<4x4xi32>
      %cst_23 = arith.constant 0x7F800000 : f32
      %41 = vector.broadcast %cst_23 : f32 to vector<4x4xf32>
      %42 = arith.select %40, %41, %32 : vector<4x4xi1>, vector<4x4xf32>
      %cst_24 = arith.constant dense<0x7F800000> : vector<4xf32>
      %43 = vector.multi_reduction <minimumf>, %42, %cst_24 [1] : vector<4x4xf32> to vector<4xf32>
      %44 = vector.shape_cast %43 : vector<4xf32> to vector<4x1xf32>
      %45 = arith.subf %37, %44 : vector<4x1xf32>
      %cst_25 = arith.constant 5.000000e-01 : f32
      %46 = vector.broadcast %cst_25 : f32 to vector<4x1xf32>
      %47 = arith.addf %45, %46 : vector<4x1xf32>
      %cst_26 = arith.constant 0.000000e+00 : f32
      %48 = vector.broadcast %cst_26 : f32 to vector<4x1xf32>
      %49 = arith.maximumf %47, %48 : vector<4x1xf32>
      %50 = vector.shape_cast %49 : vector<4x1xf32> to vector<1x4x1xf32>
      %cst_27 = arith.constant dense<0.000000e+00> : vector<1xf32>
      %51 = vector.multi_reduction <add>, %50, %cst_27 [1, 2] : vector<1x4x1xf32> to vector<1xf32>
      %52 = vector.shape_cast %51 : vector<1xf32> to vector<1x1x1xf32>
      %53 = vector.extract %52[0, 0, 0] : f32 from vector<1x1x1xf32>
      %54 = vector.broadcast %53 : f32 to vector<1x1xf32>
      %cst_28 = arith.constant 2.500000e-01 : f32
      %55 = vector.broadcast %cst_28 : f32 to vector<1x1xf32>
      %56 = arith.mulf %54, %55 : vector<1x1xf32>
      %c0_29 = arith.constant 0 : index
      %c0_30 = arith.constant 0 : index
      %57 = vector.load %arg4[%c0_29, %c0_30] : memref<1x1xf32, #tpu.memory_space<vmem>>, vector<1x1xf32>
      tpu.vector_store %arg4[%c0_29, %c0_30], %56 {strides = array<i32>} : memref<1x1xf32, #tpu.memory_space<vmem>>, vector<1x1xf32>,
    } else {
    }
    return
  }
  func.func @transform_0(%arg0: i32) -> (i32, i32, i32) {
    %c0_i32 = arith.constant 0 : i32
    %c0_i32_0 = arith.constant 0 : i32
    %c0_i32_1 = arith.constant 0 : i32
    return %c0_i32, %arg0, %c0_i32_0 : i32, i32, i32
  }
  func.func @transform_1(%arg0: i32) -> (i32, i32) {
    %c0_i32 = arith.constant 0 : i32
    %c0_i32_0 = arith.constant 0 : i32
    %c0_i32_1 = arith.constant 0 : i32
    return %c0_i32, %c0_i32_0 : i32, i32
  }
  func.func @transform_2(%arg0: i32) -> (i32, i32) {
    %c0_i32 = arith.constant 0 : i32
    %c0_i32_0 = arith.constant 0 : i32
    %c0_i32_1 = arith.constant 0 : i32
    return %c0_i32, %c0_i32_0 : i32, i32
  }
  func.func @transform_3(%arg0: i32) -> (i32, i32) {
    %c0_i32 = arith.constant 0 : i32
    %c0_i32_0 = arith.constant 0 : i32
    %c0_i32_1 = arith.constant 0 : i32
    return %c0_i32, %c0_i32_0 : i32, i32
  }
}

</mosaic_0001>

<llo_original>
// kernel: tpu_custom_call.1
$region0: #{tpu_custom_call.1}
  #allocation0 [shape = 'u32[]', space=smem, size = 0x4, offset = 0x4, fixed_abs, tag = 'smem constant byte address 0x4 - core index']
  #allocation1 [shape = 'u32[144,128]{1,0:T(1,128)}', space=vmem, size = 0x12000, scoped, tag = 'internal scratch']
  #allocation2 [shape = 'f32[4,128]{1,0:T(4,128)}', space=vmem, size = 0x800, scoped, tag = 'scratch operand']
  %s0 = inlined_call_operand.hbm [shape: bf16[4,8,128], index: 0, kind: input, shape index: {}]
  %s1 = inlined_call_operand.hbm [shape: f32[4,64], index: 1, kind: input, shape index: {}]
  %s2 = inlined_call_operand.hbm [shape: f32[64,128], index: 2, kind: input, shape index: {}]
  %s3 = inlined_call_operand.hbm [shape: f32[1,1], index: 3, kind: output, shape index: {}]
  %s4 = sld [smem:[#allocation0]]
  $region42: #{tpu_custom_call.1} parent=0
    _
  %s6 = ssub.s32 1, %s4
  %s7 = scalar_select 0, %s6, %s4
  $region1: #{tpu_custom_call.1} parent=0
    #allocation3 [shape = 'u8[8192]{0}', space=vmem, size = 0x2000, scoped, tag = 'input window, operand 0, single buffered']
    #allocation4 [shape = 's32[1]{0}', space=sflag, size = 0x4, scoped, tag = 'scoped memory for tpu_custom_call.1']
    #allocation5 [shape = 's32[1]{0}', space=sflag, size = 0x4, scoped, tag = 'scoped memory for tpu_custom_call.1']
    #allocation6 [shape = 'u8[2048]{0}', space=vmem, size = 0x800, scoped, tag = 'input window, operand 1, single buffered']
    #allocation7 [shape = 's32[1]{0}', space=sflag, size = 0x4, scoped, tag = 'scoped memory for tpu_custom_call.1']
    #allocation8 [shape = 'u8[32768]{0}', space=vmem, size = 0x8000, scoped, tag = 'input window, operand 2, single buffered']
    #allocation9 [shape = 'u8[512]{0}', space=vmem, size = 0x400, scoped, tag = 'output window, operand 0, single buffered']
    %8 = vsyncpa [#allocation4], 0
    %9 = vsyncpa [#allocation7], 0
    %10 = vsyncpa [#allocation5], 0
    // Predicated region
    $region2: #{tpu_custom_call.1} parent=1 // pred_check
      _
    $region3: #{tpu_custom_call.1} parent=1 // pred_check_branch
      %12 = sbr.rel (0) target = $region5
    $region4: #{tpu_custom_call.1} parent=1 // pred_region
      %s14 = ssub.s32 256, 256
      %15 = vsyncadd [#allocation4], %s14
      %s16 = sshll.u32 [#allocation3], 4
      %s17 = int_to_ptr.vmem [resolvable:$true] %s16
      %22 = dma.hbm_to_vmem [thread:$0]  %s0, 256, %s17, [#allocation4], 64, 64, 4
    $region5: #{tpu_custom_call.1} parent=1 // pred_fallthru
      _
    // Predicated region
    $region6: #{tpu_custom_call.1} parent=1 // pred_check
      _
    $region7: #{tpu_custom_call.1} parent=1 // pred_check_branch
      %24 = sbr.rel (0) target = $region9
    $region8: #{tpu_custom_call.1} parent=1 // pred_region
      %s26 = ssub.s32 64, 64
      %27 = vsyncadd [#allocation7], %s26
      %s29 = sshll.u32 [#allocation6], 4
      %s30 = int_to_ptr.vmem [resolvable:$true] %s29
      %32 = dma.hbm_to_vmem [thread:$0]  %s1, 64, %s30, [#allocation7]
    $region9: #{tpu_custom_call.1} parent=1 // pred_fallthru
      _
    // Predicated region
    $region10: #{tpu_custom_call.1} parent=1 // pred_check
      _
    $region11: #{tpu_custom_call.1} parent=1 // pred_check_branch
      %34 = sbr.rel (0) target = $region13
    $region12: #{tpu_custom_call.1} parent=1 // pred_region
      %s36 = ssub.s32 1024, 1024
      %37 = vsyncadd [#allocation7], %s36
      %s38 = sshll.u32 [#allocation8], 4
      %s39 = int_to_ptr.vmem [resolvable:$true] %s38
      %44 = dma.hbm_to_vmem [thread:$0]  %s2, 1024, %s39, [#allocation7], 128, 128, 8
    $region13: #{tpu_custom_call.1} parent=1 // pred_fallthru
      _
    // Predicated region
    $region14: #{tpu_custom_call.1} parent=1 // pred_check
      _
    $region15: #{tpu_custom_call.1} parent=1 // pred_check_branch
      %46 = sbr.rel (0) target = $region17
    $region16: #{tpu_custom_call.1} parent=1 // pred_region
      %47 = dma.done [#allocation4], 256
    $region17: #{tpu_custom_call.1} parent=1 // pred_fallthru
      _
    // Predicated region
    $region18: #{tpu_custom_call.1} parent=1 // pred_check
      _
    $region19: #{tpu_custom_call.1} parent=1 // pred_check_branch
      %49 = sbr.rel (0) target = $region21
    $region20: #{tpu_custom_call.1} parent=1 // pred_region
      %50 = dma.done [#allocation7], 64
    $region21: #{tpu_custom_call.1} parent=1 // pred_fallthru
      _
    // Predicated region
    $region22: #{tpu_custom_call.1} parent=1 // pred_check
      _
    $region23: #{tpu_custom_call.1} parent=1 // pred_check_branch
      %52 = sbr.rel (0) target = $region25
    $region24: #{tpu_custom_call.1} parent=1 // pred_region
      %53 = dma.done [#allocation7], 1024
    $region25: #{tpu_custom_call.1} parent=1 // pred_fallthru
      _
    %p54 = scmp.eq.s32.totalorder 0, 0
    // Predicated region
    $region26: #{tpu_custom_call.1} parent=1 // pred_check
      %p55 = pneg %p54
    $region27: #{tpu_custom_call.1} parent=1 // pred_check_branch
      %57 = sbr.rel (%p55) target = $region29
    $region28: #{tpu_custom_call.1} parent=1 // pred_region
      %58 = vst [vmem:[#allocation2] sm:$0xf] 0.0
    $region29: #{tpu_custom_call.1} parent=1 // pred_fallthru
      _
    %v59 = vld [vmem:[#allocation2] sm:$0xf]
    %v60 = vld [vmem:[#allocation3] sm:$0xf]
    %v61 = vld [vmem:[#allocation3 + $0x4] sm:$0xf]
    %v62 = vld [vmem:[#allocation3 + $0x8] sm:$0xf]
    %v63 = vld [vmem:[#allocation3 + $0xc] sm:$0xf]
    %v64 = vunpack.c.l.bf16 %v60
    %v65 = vunpack.c.l.bf16 %v61
    %v66 = vunpack.c.l.bf16 %v62
    %v67 = vunpack.c.l.bf16 %v63
    %v68 = vrot.slane %v64, 4
    %v69 = vadd.f32 %v64, %v68
    %v70 = vrot.slane %v69, 2
    %v71 = vadd.f32 %v69, %v70
    %v72 = vrot.slane %v71, 1
    %v73 = vadd.f32 %v71, %v72
    %v74 = vrot.slane %v65, 4
    %v75 = vadd.f32 %v65, %v74
    %v76 = vrot.slane %v75, 2
    %v77 = vadd.f32 %v75, %v76
    %v78 = vrot.slane %v77, 1
    %v79 = vadd.f32 %v77, %v78
    %v80 = vrot.slane %v66, 4
    %v81 = vadd.f32 %v66, %v80
    %v82 = vrot.slane %v81, 2
    %v83 = vadd.f32 %v81, %v82
    %v84 = vrot.slane %v83, 1
    %v85 = vadd.f32 %v83, %v84
    %v86 = vrot.slane %v67, 4
    %v87 = vadd.f32 %v67, %v86
    %v88 = vrot.slane %v87, 2
    %v89 = vadd.f32 %v87, %v88
    %v90 = vrot.slane %v89, 1
    %v91 = vadd.f32 %v89, %v90
    %vm96 = vcmask 1041409
    %v97 = vsel %vm96, %v79, %v73
    %vm98 = vcmask 1042434
    %v99 = vsel %vm98, %v85, %v97
    %vm100 = vcmask 1043459
    %v101 = vsel %vm100, %v91, %v99
    %v103 = vadd.f32 %v59, %v101
    %104 = vst [vmem:[#allocation2] sm:$0xf] %v103
    // Predicated region
    $region30: #{tpu_custom_call.1} parent=1 // pred_check
      %p105 = pneg %p54
    $region31: #{tpu_custom_call.1} parent=1 // pred_check_branch
      %107 = sbr.rel (%p105) target = $region33
    $region32: #{tpu_custom_call.1} parent=1 // pred_region
      %v108 = vld [vmem:[#allocation2] sm:$0xf]
      %v109 = vmul.f32 %v108, 0.125
      %v110 = vld [vmem:[#allocation6] sm:$0xf]
      %v111 = vld [vmem:[#allocation8] sm:$0xff]
      %v112 = vld [vmem:[#allocation8 + $0x8] sm:$0xff]
      %v113 = vld [vmem:[#allocation8 + $0x10] sm:$0xff]
      %v114 = vld [vmem:[#allocation8 + $0x18] sm:$0xff]
      %v115 = vld [vmem:[#allocation8 + $0x20] sm:$0xff]
      %v116 = vld [vmem:[#allocation8 + $0x28] sm:$0xff]
      %v117 = vld [vmem:[#allocation8 + $0x30] sm:$0xff]
      %v118 = vld [vmem:[#allocation8 + $0x38] sm:$0xff]
      %vm119 = vcmask 523264
      %v121 = vsel %vm119, %v110, 0
      %123 = vmatprep.subr.mxu0 0.0
      %124 = vmatpush1.msra.mxu0 %v111
      %125 = vmatprep.subr.mxu0 0.0
      %126 = vmatpush1.msra.mxu0 %v112
      %127 = vmatprep.subr.mxu0 0.0
      %128 = vmatpush1.msra.mxu0 %v113
      %129 = vmatprep.subr.mxu0 0.0
      %130 = vmatpush1.msra.mxu0 %v114
      %131 = vmatprep.subr.mxu0 0.0
      %132 = vmatpush1.msra.mxu0 %v115
      %133 = vmatprep.subr.mxu0 0.0
      %134 = vmatpush1.msra.mxu0 %v116
      %135 = vmatprep.subr.mxu0 0.0
      %136 = vmatpush1.msra.mxu0 %v117
      %137 = vmatprep.subr.mxu0 0.0
      %138 = vmatpush1.msra.mxu0 %v118
      %139 = vmatprep.subr.mxu0 0.0
      %140 = vmatpush1.msra.mxu0 0.0
      %141 = vmatprep.subr.mxu0 0.0
      %142 = vmatpush1.msra.mxu0 0.0
      %143 = vmatprep.subr.mxu0 0.0
      %144 = vmatpush1.msra.mxu0 0.0
      %145 = vmatprep.subr.mxu0 0.0
      %146 = vmatpush1.msra.mxu0 0.0
      %147 = vmatprep.subr.mxu0 0.0
      %148 = vmatpush1.msra.mxu0 0.0
      %149 = vmatprep.subr.mxu0 0.0
      %150 = vmatpush1.msra.mxu0 0.0
      %151 = vmatprep.subr.mxu0 0.0
      %152 = vmatpush1.msra.mxu0 0.0
      %153 = vmatprep.subr.mxu0 0.0
      %154 = vmatpush1.msra.mxu0 0.0
      %155 = vmatprep.subr.mxu0 0.0
      %156 = vmatpush1.msra.mxu0 0.0
      %157 = vmatprep.subr.mxu0 0.0
      %158 = vmatpush1.msra.mxu0 0.0
      %159 = vmatprep.subr.mxu0 0.0
      %160 = vmatpush1.msra.mxu0 0.0
      %161 = vmatprep.subr.mxu0 0.0
      %162 = vmatpush1.msra.mxu0 0.0
      %163 = vmatprep.subr.mxu0 0.0
      %164 = vmatpush1.msra.mxu0 0.0
      %165 = vmatprep.subr.mxu0 0.0
      %166 = vmatpush1.msra.mxu0 0.0
      %167 = vmatprep.subr.mxu0 0.0
      %168 = vmatpush1.msra.mxu0 0.0
      %169 = vmatprep.subr.mxu0 0.0
      %170 = vmatpush1.msra.mxu0 0.0
      %171 = vmatprep.subr.mxu0 0.0
      %172 = vmatpush1.msra.mxu0 0.0
      %173 = vmatprep.subr.mxu0 0.0
      %174 = vmatpush1.msra.mxu0 0.0
      %175 = vmatprep.subr.mxu0 0.0
      %176 = vmatpush1.msra.mxu0 0.0
      %177 = vmatprep.subr.mxu0 0.0
      %178 = vmatpush1.msra.mxu0 0.0
      %179 = vmatprep.subr.mxu0 0.0
      %180 = vmatpush1.msra.mxu0 0.0
      %181 = vmatprep.subr.mxu0 0.0
      %182 = vmatpush1.msra.mxu0 0.0
      %183 = vmatprep.subr.mxu0 0.0
      %184 = vmatpush1.msra.mxu0 0.0
      %185 = vmatprep.subr.mxu0 0.0
      %186 = vmatpush1.msra.mxu0 0.0
      %187 = vmatprep.mubr.f32.mxu0 0.0
      %188 = vmatmul.mubr.f32.gmra.mrb[0].mxu0 %v121
      %v189 = vpop.f32.mrb[0].mxu0
      %v190 = vadd.f32 0.0, %v189
      %v191 = vpop.f32.mrb[0].mxu0
      %192 = vdwg.mxu0
      %v193 = vmul.f32 %v109, %v109
      %vm194 = vcmask 1043456
      %v195 = vsel %vm194, %v193, 0.0
      %196 = vadd.xlane.f32.xlu0 %v195
      %v197 = vpop.xlane.xlu0 %196
      %v198 = vrsqrt.pop %v197
      %v199 = vmul.f32 %v109, %v198
      %v200 = vmul.f32 %v190, %v190
      %v201 = vsel %vm194, %v200, 0.0
      %202 = vadd.xlane.f32.xlu0 %v201
      %v203 = vpop.xlane.xlu0 %202
      %v204 = vrsqrt.pop %v203
      %v205 = vmul.f32 %v190, %v204
      %206 = vmatprep.subr.mxu0 0.0
      %207 = vmatpush1.xpose.msra.mxu0 %v205
      %208 = vmatprep.subr.mxu0 0.0
      %209 = vmatpush1.xpose.msra.mxu0 0.0
      %210 = vmatprep.subr.mxu0 0.0
      %211 = vmatpush1.xpose.msra.mxu0 0.0
      %212 = vmatprep.subr.mxu0 0.0
      %213 = vmatpush1.xpose.msra.mxu0 0.0
      %214 = vmatprep.subr.mxu0 0.0
      %215 = vmatpush1.xpose.msra.mxu0 0.0
      %216 = vmatprep.subr.mxu0 0.0
      %217 = vmatpush1.xpose.msra.mxu0 0.0
      %218 = vmatprep.subr.mxu0 0.0
      %219 = vmatpush1.xpose.msra.mxu0 0.0
      %220 = vmatprep.subr.mxu0 0.0
      %221 = vmatpush1.xpose.msra.mxu0 0.0
      %222 = vmatprep.subr.mxu0 0.0
      %223 = vmatpush1.xpose.msra.mxu0 0.0
      %224 = vmatprep.subr.mxu0 0.0
      %225 = vmatpush1.xpose.msra.mxu0 0.0
      %226 = vmatprep.subr.mxu0 0.0
      %227 = vmatpush1.xpose.msra.mxu0 0.0
      %228 = vmatprep.subr.mxu0 0.0
      %229 = vmatpush1.xpose.msra.mxu0 0.0
      %230 = vmatprep.subr.mxu0 0.0
      %231 = vmatpush1.xpose.msra.mxu0 0.0
      %232 = vmatprep.subr.mxu0 0.0
      %233 = vmatpush1.xpose.msra.mxu0 0.0
      %234 = vmatprep.subr.mxu0 0.0
      %235 = vmatpush1.xpose.msra.mxu0 0.0
      %236 = vmatprep.subr.mxu0 0.0
      %237 = vmatpush1.xpose.msra.mxu0 0.0
      %238 = vmatprep.subr.mxu0 0.0
      %239 = vmatpush1.xpose.msra.mxu0 0.0
      %240 = vmatprep.subr.mxu0 0.0
      %241 = vmatpush1.xpose.msra.mxu0 0.0
      %242 = vmatprep.subr.mxu0 0.0
      %243 = vmatpush1.xpose.msra.mxu0 0.0
      %244 = vmatprep.subr.mxu0 0.0
      %245 = vmatpush1.xpose.msra.mxu0 0.0
      %246 = vmatprep.subr.mxu0 0.0
      %247 = vmatpush1.xpose.msra.mxu0 0.0
      %248 = vmatprep.subr.mxu0 0.0
      %249 = vmatpush1.xpose.msra.mxu0 0.0
      %250 = vmatprep.subr.mxu0 0.0
      %251 = vmatpush1.xpose.msra.mxu0 0.0
      %252 = vmatprep.subr.mxu0 0.0
      %253 = vmatpush1.xpose.msra.mxu0 0.0
      %254 = vmatprep.subr.mxu0 0.0
      %255 = vmatpush1.xpose.msra.mxu0 0.0
      %256 = vmatprep.subr.mxu0 0.0
      %257 = vmatpush1.xpose.msra.mxu0 0.0
      %258 = vmatprep.subr.mxu0 0.0
      %259 = vmatpush1.xpose.msra.mxu0 0.0
      %260 = vmatprep.subr.mxu0 0.0
      %261 = vmatpush1.xpose.msra.mxu0 0.0
      %262 = vmatprep.subr.mxu0 0.0
      %263 = vmatpush1.xpose.msra.mxu0 0.0
      %264 = vmatprep.subr.mxu0 0.0
      %265 = vmatpush1.xpose.msra.mxu0 0.0
      %266 = vmatprep.subr.mxu0 0.0
      %267 = vmatpush1.xpose.msra.mxu0 0.0
      %268 = vmatprep.subr.mxu0 0.0
      %269 = vmatpush1.xpose.msra.mxu0 0.0
      %270 = vmatprep.mubr.f32.mxu0 0.0
      %271 = vmatmul.mubr.f32.gmra.mrb[0].mxu0 %v199
      %v272 = vpop.f32.mrb[0].mxu0
      %v273 = vadd.f32 0.0, %v272
      %v274 = vpop.f32.mrb[0].mxu0
      %275 = vdwg.mxu0
      %v276 = vsub.f32 1.0, %v273
      %v277 = vmul.f32 %v199, %v205
      %v278 = vsel %vm194, %v277, 0.0
      %279 = vadd.xlane.f32.xlu0 %v278
      %v280 = vpop.xlane.xlu0 %279
      %v281 = vsub.f32 1.0, %v280
      %v282 = vlaneseq
      %v283 = vshrl.u32 %v282, 7
      %v284 = vlaneseq
      %v285 = vand.u32 %v284, 127
      %vm286 = vcmp.eq.s32.totalorder %v283, %v285
      %v287 = vsel %vm286, inf, %v276
      %vm288 = vcmask 27648
      %v289 = vsel %vm288, %v287, inf
      %290 = vmin.xlane.f32.xlu0 %v289
      %v291 = vpop.xlane.xlu0 %290
      %v292 = vsub.f32 %v281, %v291
      %v293 = vadd.f32 %v292, 0.5
      %v294 = vmax.f32 %v293, 0.0
      %vm295 = vcmask 3072
      %v296 = vsel %vm295, %v294, 0.0
      %297 = vadd.xlane.f32.xlu0 %v296
      %v298 = vpop.xlane.xlu0 %297
      %v299 = vrot.slane %v298, 4
      %v300 = vadd.f32 %v298, %v299
      %v301 = vrot.slane %v300, 2
      %v302 = vadd.f32 %v300, %v301
      %v303 = vrot.slane %v302, 1
      %v304 = vadd.f32 %v302, %v303
      %s305 = vtos %v304
      %v306 = vstv %s305
      %v307 = vmul.f32 %v306, 0.25
      %vm308 = vcmask 0
      %309 = vst.msk [vmem:[#allocation9] sm:$0x1] %vm308, %v307
    $region33: #{tpu_custom_call.1} parent=1 // pred_fallthru
      _
    // Predicated region
    $region34: #{tpu_custom_call.1} parent=1 // pred_check
      _
    $region35: #{tpu_custom_call.1} parent=1 // pred_check_branch
      %311 = sbr.rel (0) target = $region37
    $region36: #{tpu_custom_call.1} parent=1 // pred_region
      %s313 = ssub.s32 16, 16
      %314 = vsyncadd [#allocation5], %s313
      %s316 = sshll.u32 [#allocation9], 4
      %s317 = int_to_ptr.vmem [resolvable:$true] %s316
      %319 = dma.vmem_to_hbm [thread:$0]  %s317, 16, %s3, [#allocation5]
    $region37: #{tpu_custom_call.1} parent=1 // pred_fallthru
      _
    // Predicated region
    $region38: #{tpu_custom_call.1} parent=1 // pred_check
      _
    $region39: #{tpu_custom_call.1} parent=1 // pred_check_branch
      %321 = sbr.rel (0) target = $region41
    $region40: #{tpu_custom_call.1} parent=1 // pred_region
      %322 = dma.done [#allocation5], 16
    $region41: #{tpu_custom_call.1} parent=1 // pred_fallthru
      _
    %323 = vsyncpa [#allocation4], 1
    %324 = vsyncpa [#allocation7], 1
    %325 = vsyncpa [#allocation5], 1

</llo_original>
